<compile_context>
chip_gen: v5e
topology: v5e:2x2
jax: 0.10.0
libtpu: 0.0.40
codegen_flags: <defaults>
</compile_context>

<pallas_src>
import functools

import jax
import jax.numpy as jnp
from jax.experimental import pallas as pl
from jax.experimental.pallas import tpu as pltpu


# ---------------------------------------------------------------------------
# Wrapper-side helpers (parameter / scalar / layout preprocessing only)
# ---------------------------------------------------------------------------

def _change_contrast(X, c):
    """change_contrast() from the PyTorch module (4-D or 5-D input)."""
    if X.ndim == 4:
        dims = (-3, -2, -1)
    elif X.ndim == 5:
        dims = (-4, -2, -1)
    else:
        raise ValueError("Wrong dimensionality of input tensor")
    mean = jnp.mean(X, axis=dims, keepdims=True)
    return X * c + (1.0 - c) * mean


def _lifted_conv_matrix(w, cs):
    """Build the LiftedConv weights as a GEMM matrix (planes*K, 9*cin*K).

    Output channels come out directly in (plane-major, contrast-minor) order
    (the order LiftedBatchNorm2d / the next LiftedConv expect), and the
    trailing `out / len(cs)` of LiftedConv.forward is folded in.
    """
    cout, cin, kh, kw = w.shape
    K = len(cs)
    # Lift(cs[::-1]) applied to the 4-D kernel -> (cout, cin, K, kh, kw)
    lifted = jnp.stack([_change_contrast(w, c) for c in cs[::-1]], axis=2)
    # torch.cat([change_contrast(lifted, c) for c in cs], dim=0)
    k_stack = jnp.concatenate([_change_contrast(lifted, c) for c in cs], axis=0)
    k_stack = k_stack.reshape(K * cout, cin * K, kh, kw)           # (K*cout, cin*K, 3, 3)
    # Re-order output channels (contrast-major, plane-minor) -> (plane-major,
    # contrast-minor): replaces torch's .view().transpose(1,2) with a free
    # one-time weight permutation.
    k_stack = (k_stack.reshape(K, cout, cin * K, kh, kw)
               .transpose(1, 0, 2, 3, 4)
               .reshape(cout * K, cin * K, kh, kw))
    k_stack = k_stack / K                                          # fold "out / len(cs)"
    # GEMM layout matching tap-major im2col: Wm[o, (dy*3+dx)*(cin*K) + c]
    return jnp.transpose(k_stack, (0, 2, 3, 1)).reshape(cout * K, kh * kw * cin * K)


def _pick_tile(hw, max_tile=2048):
    """Largest lane-dense (multiple-of-128) tile that divides hw, else hw."""
    for t in range(max_tile, 127, -128):
        if hw % t == 0:
            return t
    return hw


# ---------------------------------------------------------------------------
# Pallas kernels
# ---------------------------------------------------------------------------

def _conv_stats_kernel(p_ref, w_ref, y_ref, s_ref, ss_ref):
    """Lifted 3x3 conv tile as one MXU GEMM + fused BN partial statistics.

    p_ref : (1, 9*Cf, THW)   im2col patch tile of one sample (lane-dense)
    w_ref : (Co, 9*Cf)       lifted conv weights (include the /len(cs))
    y_ref : (1, Co, THW)     conv output tile (bulk, unmasked store)
    s_ref : (1, 1, Co, 1)    per-channel partial sum over this tile
    ss_ref: (1, 1, Co, 1)    per-channel partial sum of squares
    """
    acc = jnp.dot(w_ref[...], p_ref[0], preferred_element_type=jnp.float32)
    y_ref[0] = acc
    s_ref[0, 0] = jnp.sum(acc, axis=-1, keepdims=True)
    ss_ref[0, 0] = jnp.sum(acc * acc, axis=-1, keepdims=True)


def _bn_relu_kernel(y_ref, scale_ref, bias_ref, o_ref):
    """out = relu(y * scale + bias), per-channel scale/bias."""
    z = y_ref[0] * scale_ref[...] + bias_ref[...]
    o_ref[0] = jnp.maximum(z, 0.0)


def _bn_add_relu_kernel(y_ref, r_ref, scale_ref, bias_ref, o_ref):
    """out = relu(y * scale + bias + residual)."""
    z = y_ref[0] * scale_ref[...] + bias_ref[...] + r_ref[0]
    o_ref[0] = jnp.maximum(z, 0.0)


# ---------------------------------------------------------------------------
# pallas_call wrappers
# ---------------------------------------------------------------------------

def _conv_pass(xf, wm, pad_val):
    """Mean-padded lifted 3x3 conv of (N, Cf, H, W) with GEMM weights (Co, 9*Cf)."""
    N, Cf, H, W = xf.shape
    Co = wm.shape[0]
    HW = H * W
    xp = jnp.pad(xf, ((0, 0), (0, 0), (1, 1), (1, 1)), constant_values=pad_val)
    # im2col (tap-major, channel-minor) -> (N, 9*Cf, H*W); fused XLA relayout.
    cols = [xp[:, :, dy:dy + H, dx:dx + W].reshape(N, Cf, HW)
            for dy in range(3) for dx in range(3)]
    patches = jnp.concatenate(cols, axis=1)

    thw = _pick_tile(HW)
    nt = HW // thw
    flops = 2 * N * Co * (9 * Cf) * HW
    bytes_accessed = 4 * (N * 9 * Cf * HW + Co * 9 * Cf + N * Co * HW + 2 * N * nt * Co)

    return pl.pallas_call(
        _conv_stats_kernel,
        out_shape=(
            jax.ShapeDtypeStruct((N, Co, HW), jnp.float32),
            jax.ShapeDtypeStruct((N, nt, Co, 1), jnp.float32),
            jax.ShapeDtypeStruct((N, nt, Co, 1), jnp.float32),
        ),
        grid=(N, nt),
        in_specs=[
            pl.BlockSpec((1, 9 * Cf, thw), lambda n, t: (n, 0, t)),
            pl.BlockSpec((Co, 9 * Cf), lambda n, t: (0, 0)),
        ],
        out_specs=(
            pl.BlockSpec((1, Co, thw), lambda n, t: (n, 0, t)),
            pl.BlockSpec((1, 1, Co, 1), lambda n, t: (n, t, 0, 0)),
            pl.BlockSpec((1, 1, Co, 1), lambda n, t: (n, t, 0, 0)),
        ),
        compiler_params=pltpu.CompilerParams(
            dimension_semantics=("parallel", "parallel"),
            vmem_limit_bytes=24 * 1024 * 1024,
        ),
        cost_estimate=pl.CostEstimate(
            flops=flops, transcendentals=0, bytes_accessed=bytes_accessed),
    )(patches, wm)


def _bn_act(y, scale, bias, residual=None):
    """Fused BN (precomputed per-channel scale/bias) + [identity residual] + ReLU."""
    N, C, HW = y.shape
    thw = _pick_tile(HW)
    nt = HW // thw
    tile_spec = pl.BlockSpec((1, C, thw), lambda n, t: (n, 0, t))
    vec_spec = pl.BlockSpec((C, 1), lambda n, t: (0, 0))
    if residual is None:
        kernel = _bn_relu_kernel
        in_specs = [tile_spec, vec_spec, vec_spec]
        args = (y, scale, bias)
    else:
        kernel = _bn_add_relu_kernel
        in_specs = [tile_spec, tile_spec, vec_spec, vec_spec]
        args = (y, residual, scale, bias)
    return pl.pallas_call(
        kernel,
        out_shape=jax.ShapeDtypeStruct((N, C, HW), jnp.float32),
        grid=(N, nt),
        in_specs=in_specs,
        out_specs=tile_spec,
        compiler_params=pltpu.CompilerParams(
            dimension_semantics=("parallel", "parallel"),
            vmem_limit_bytes=24 * 1024 * 1024,
        ),
    )(*args)


def _bn_params(s, ss, count, eps=1e-5):
    """Training-mode BatchNorm2d(affine=False) scale/bias from partial sums."""
    mu = jnp.sum(s, axis=(0, 1)) / count          # (C, 1)
    ex2 = jnp.sum(ss, axis=(0, 1)) / count
    var = jnp.maximum(ex2 - mu * mu, 0.0)         # biased variance
    scale = jax.lax.rsqrt(var + eps)
    return scale, -mu * scale


def basic_block_forward(x, conv1_w, conv2_w, cs, eps=1e-5):
    """BasicBlock(inplanes, planes, cs, activation=ReLU, stride=1, downsample=None)."""
    N, cin, K, H, W = x.shape
    planes = conv1_w.shape[0]
    assert K == len(cs)
    assert cin == planes, "identity residual needs inplanes == planes"
    HW = H * W
    C1 = planes * K

    xf = x.reshape(N, cin * K, H, W)       # channel-flat (plane-major, contrast-minor)
    xflat = xf.reshape(N, cin * K, HW)     # residual, lane-dense layout

    wm1 = _lifted_conv_matrix(conv1_w, cs)  # (planes*K, 9*cin*K)
    wm2 = _lifted_conv_matrix(conv2_w, cs)  # (planes*K, 9*planes*K)

    # conv1 (pads with the global mean of its input) + fused BN partial stats
    y1, s1, ss1 = _conv_pass(xf, wm1, jnp.mean(xf))
    scale1, bias1 = _bn_params(s1, ss1, N * HW, eps)
    z1 = _bn_act(y1, scale1, bias1)                        # bn1 + ReLU

    # conv2
    y2, s2, ss2 = _conv_pass(z1.reshape(N, C1, H, W), wm2, jnp.mean(z1))
    scale2, bias2 = _bn_params(s2, ss2, N * HW, eps)
    out = _bn_act(y2, scale2, bias2, residual=xflat)       # bn2 + identity + ReLU

    return out.reshape(N, planes, K, H, W)


# ---------------------------------------------------------------------------
# Pure-JAX reference mirroring the PyTorch module
# ---------------------------------------------------------------------------

def _lifted_conv_ref(X, w, cs):
    cout = w.shape[0]
    lifted = jnp.stack([_change_contrast(w, c) for c in cs[::-1]], axis=2)
    k_stack = jnp.concatenate([_change_contrast(lifted, c) for c in cs], axis=0)
    kcout, kcin, kd, kh, kw = k_stack.shape
    k_stack = k_stack.reshape(kcout, kcin * kd, kh, kw)
    ib, icin, idd, ih, iw = X.shape
    fX = X.reshape(ib, icin * idd, ih, iw)
    fX = jnp.pad(fX, ((0, 0), (0, 0), (1, 1), (1, 1)), constant_values=jnp.mean(fX))
    out = jax.lax.conv_general_dilated(
        fX, k_stack, window_strides=(1, 1), padding="VALID",
        dimension_numbers=("NCHW", "OIHW", "NCHW"),
        precision=jax.lax.Precision.HIGHEST)
    _, _, oh, ow = out.shape
    out = out.reshape(ib, idd, cout, oh, ow)
    out = jnp.transpose(out, (0, 2, 1, 3, 4))
    return out / len(cs)


def _lifted_bn_ref(X, eps=1e-5):
    b, c, d, h, w = X.shape
    Xf = X.reshape(b, c * d, h, w)
    mu = jnp.mean(Xf, axis=(0, 2, 3), keepdims=True)
    var = jnp.var(Xf, axis=(0, 2, 3), keepdims=True)   # biased, training-mode BN
    Xf = (Xf - mu) / jnp.sqrt(var + eps)
    return Xf.reshape(b, c, d, h, w)


def basic_block_reference(x, conv1_w, conv2_w, cs):
    identity = x
    out = _lifted_conv_ref(x, conv1_w, cs)
    out = _lifted_bn_ref(out)
    out = jnp.maximum(out, 0.0)
    out = _lifted_conv_ref(out, conv2_w, cs)
    out = _lifted_bn_ref(out)
    out = out + identity
    return jnp.maximum(out, 0.0)


if __name__ == "__main__":
    key = jax.random.PRNGKey(0)
    kx, kw1, kw2 = jax.random.split(key, 3)

    cs = (0.5, 1.0, 1.5)
    N, planes, H, W = 2, 4, 16, 16
    K = len(cs)

    x = jax.random.normal(kx, (N, planes, K, H, W), dtype=jnp.float32)
    conv1_w = jax.random.normal(kw1, (planes, planes, 3, 3), dtype=jnp.float32)
    conv2_w = jax.random.normal(kw2, (planes, planes, 3, 3), dtype=jnp.float32)

    fwd = jax.jit(functools.partial(basic_block_forward, cs=cs))
    out = jax.block_until_ready(fwd(x, conv1_w, conv2_w))

    ref = basic_block_reference(x, conv1_w, conv2_w, cs)
    assert out.shape == (N, planes, K, H, W), out.shape
    err = float(jnp.max(jnp.abs(out - ref)))
    assert jnp.allclose(out, ref, atol=1e-2, rtol=1e-2), f"mismatch vs reference, max abs err={err}"

    print("KERNEL_OK")
</pallas_src>

<mosaic_0001>
module attributes {stable_mosaic.version = 11 : i64} {
  func.func @_conv_stats_kernel(%arg0: i32, %arg1: i32, %arg2: memref<1x108x256xf32, #tpu.memory_space<vmem>>, %arg3: memref<12x108xf32, #tpu.memory_space<vmem>>, %arg4: memref<1x12x256xf32, #tpu.memory_space<vmem>>, %arg5: memref<1x1x12x1xf32, #tpu.memory_space<vmem>>, %arg6: memref<1x1x12x1xf32, #tpu.memory_space<vmem>>) attributes {dimension_semantics = [#tpu.dimension_semantics<parallel>, #tpu.dimension_semantics<parallel>], iteration_bounds = array<i64: 2, 1>, scalar_prefetch = 0 : i64, scratch_operands = 0 : i64, tpu.core_type = #tpu.core_type<tc>, window_params = [{transform_indices = @transform_0, window_bounds = array<i64: 1, 108, 256>}, {pipeline_mode = #tpu.pipeline_mode<synchronous>, transform_indices = @transform_1, window_bounds = array<i64: 12, 108>}, {transform_indices = @transform_2, window_bounds = array<i64: 1, 12, 256>}, {transform_indices = @transform_3, window_bounds = array<i64: 1, 1, 12, 1>}, {transform_indices = @transform_4, window_bounds = array<i64: 1, 1, 12, 1>}]} {
    %c0 = arith.constant 0 : index
    %c0_0 = arith.constant 0 : index
    %0 = vector.load %arg3[%c0, %c0_0] : memref<12x108xf32, #tpu.memory_space<vmem>>, vector<12x108xf32>
    %c0_1 = arith.constant 0 : index
    %c0_2 = arith.constant 0 : index
    %c0_3 = arith.constant 0 : index
    %1 = vector.load %arg2[%c0_1, %c0_2, %c0_3] : memref<1x108x256xf32, #tpu.memory_space<vmem>>, vector<1x108x256xf32>
    %2 = vector.shape_cast %1 : vector<1x108x256xf32> to vector<108x256xf32>
    %cst = arith.constant dense<0.000000e+00> : vector<12x256xf32>
    %3 = tpu.matmul %0, %2, %cst {dimension_numbers = #tpu.dot_dimension_numbers<[1], [0], [0], [1], [0, 0, 1, 1], [], []>} : vector<12x108xf32>, vector<108x256xf32>, vector<12x256xf32> -> vector<12x256xf32>
    %c0_4 = arith.constant 0 : index
    %c0_5 = arith.constant 0 : index
    %c0_6 = arith.constant 0 : index
    %4 = vector.load %arg4[%c0_4, %c0_5, %c0_6] : memref<1x12x256xf32, #tpu.memory_space<vmem>>, vector<1x12x256xf32>
    %5 = vector.shape_cast %4 : vector<1x12x256xf32> to vector<12x256xf32>
    %6 = vector.shape_cast %3 : vector<12x256xf32> to vector<1x12x256xf32>
    tpu.vector_store %arg4[%c0_4, %c0_5, %c0_6], %6 {strides = array<i32>} : memref<1x12x256xf32, #tpu.memory_space<vmem>>, vector<1x12x256xf32>,
    %cst_7 = arith.constant dense<0.000000e+00> : vector<12xf32>
    %7 = vector.multi_reduction <add>, %3, %cst_7 [1] : vector<12x256xf32> to vector<12xf32>
    %8 = vector.shape_cast %7 : vector<12xf32> to vector<12x1xf32>
    %c0_8 = arith.constant 0 : index
    %c0_9 = arith.constant 0 : index
    %c0_10 = arith.constant 0 : index
    %c0_11 = arith.constant 0 : index
    %9 = vector.load %arg5[%c0_8, %c0_9, %c0_10, %c0_11] : memref<1x1x12x1xf32, #tpu.memory_space<vmem>>, vector<1x1x12x1xf32>
    %10 = vector.shape_cast %9 : vector<1x1x12x1xf32> to vector<12x1xf32>
    %11 = vector.shape_cast %8 : vector<12x1xf32> to vector<1x1x12x1xf32>
    tpu.vector_store %arg5[%c0_8, %c0_9, %c0_10, %c0_11], %11 {strides = array<i32>} : memref<1x1x12x1xf32, #tpu.memory_space<vmem>>, vector<1x1x12x1xf32>,
    %12 = arith.mulf %3, %3 : vector<12x256xf32>
    %cst_12 = arith.constant dense<0.000000e+00> : vector<12xf32>
    %13 = vector.multi_reduction <add>, %12, %cst_12 [1] : vector<12x256xf32> to vector<12xf32>
    %14 = vector.shape_cast %13 : vector<12xf32> to vector<12x1xf32>
    %c0_13 = arith.constant 0 : index
    %c0_14 = arith.constant 0 : index
    %c0_15 = arith.constant 0 : index
    %c0_16 = arith.constant 0 : index
    %15 = vector.load %arg6[%c0_13, %c0_14, %c0_15, %c0_16] : memref<1x1x12x1xf32, #tpu.memory_space<vmem>>, vector<1x1x12x1xf32>
    %16 = vector.shape_cast %15 : vector<1x1x12x1xf32> to vector<12x1xf32>
    %17 = vector.shape_cast %14 : vector<12x1xf32> to vector<1x1x12x1xf32>
    tpu.vector_store %arg6[%c0_13, %c0_14, %c0_15, %c0_16], %17 {strides = array<i32>} : memref<1x1x12x1xf32, #tpu.memory_space<vmem>>, vector<1x1x12x1xf32>,
    return
  }
  func.func @transform_0(%arg0: i32, %arg1: i32) -> (i32, i32, i32) {
    %c0_i32 = arith.constant 0 : i32
    %c0_i32_0 = arith.constant 0 : i32
    return %arg0, %c0_i32, %arg1 : i32, i32, i32
  }
  func.func @transform_1(%arg0: i32, %arg1: i32) -> (i32, i32) {
    %c0_i32 = arith.constant 0 : i32
    %c0_i32_0 = arith.constant 0 : i32
    %c0_i32_1 = arith.constant 0 : i32
    return %c0_i32, %c0_i32_0 : i32, i32
  }
  func.func @transform_2(%arg0: i32, %arg1: i32) -> (i32, i32, i32) {
    %c0_i32 = arith.constant 0 : i32
    %c0_i32_0 = arith.constant 0 : i32
    return %arg0, %c0_i32, %arg1 : i32, i32, i32
  }
  func.func @transform_3(%arg0: i32, %arg1: i32) -> (i32, i32, i32, i32) {
    %c0_i32 = arith.constant 0 : i32
    %c0_i32_0 = arith.constant 0 : i32
    %c0_i32_1 = arith.constant 0 : i32
    return %arg0, %arg1, %c0_i32, %c0_i32_0 : i32, i32, i32, i32
  }
  func.func @transform_4(%arg0: i32, %arg1: i32) -> (i32, i32, i32, i32) {
    %c0_i32 = arith.constant 0 : i32
    %c0_i32_0 = arith.constant 0 : i32
    %c0_i32_1 = arith.constant 0 : i32
    return %arg0, %arg1, %c0_i32, %c0_i32_0 : i32, i32, i32, i32
  }
}

module attributes {stable_mosaic.version = 11 : i64} {
  func.func @_bn_relu_kernel(%arg0: i32, %arg1: i32, %arg2: memref<1x12x256xf32, #tpu.memory_space<vmem>>, %arg3: memref<12x1xf32, #tpu.memory_space<vmem>>, %arg4: memref<12x1xf32, #tpu.memory_space<vmem>>, %arg5: memref<1x12x256xf32, #tpu.memory_space<vmem>>) attributes {dimension_semantics = [#tpu.dimension_semantics<parallel>, #tpu.dimension_semantics<parallel>], iteration_bounds = array<i64: 2, 1>, scalar_prefetch = 0 : i64, scratch_operands = 0 : i64, tpu.core_type = #tpu.core_type<tc>, window_params = [{transform_indices = @transform_0, window_bounds = array<i64: 1, 12, 256>}, {pipeline_mode = #tpu.pipeline_mode<synchronous>, transform_indices = @transform_1, window_bounds = array<i64: 12, 1>}, {pipeline_mode = #tpu.pipeline_mode<synchronous>, transform_indices = @transform_2, window_bounds = array<i64: 12, 1>}, {transform_indices = @transform_3, window_bounds = array<i64: 1, 12, 256>}]} {
    %c0 = arith.constant 0 : index
    %c0_0 = arith.constant 0 : index
    %c0_1 = arith.constant 0 : index
    %0 = vector.load %arg2[%c0, %c0_0, %c0_1] : memref<1x12x256xf32, #tpu.memory_space<vmem>>, vector<1x12x256xf32>
    %1 = vector.shape_cast %0 : vector<1x12x256xf32> to vector<12x256xf32>
    %c0_2 = arith.constant 0 : index
    %c0_3 = arith.constant 0 : index
    %2 = vector.load %arg3[%c0_2, %c0_3] : memref<12x1xf32, #tpu.memory_space<vmem>>, vector<12x1xf32>
    %3 = vector.broadcast %2 : vector<12x1xf32> to vector<12x256xf32>
    %4 = arith.mulf %1, %3 : vector<12x256xf32>
    %c0_4 = arith.constant 0 : index
    %c0_5 = arith.constant 0 : index
    %5 = vector.load %arg4[%c0_4, %c0_5] : memref<12x1xf32, #tpu.memory_space<vmem>>, vector<12x1xf32>
    %6 = vector.broadcast %5 : vector<12x1xf32> to vector<12x256xf32>
    %7 = arith.addf %4, %6 : vector<12x256xf32>
    %cst = arith.constant 0.000000e+00 : f32
    %8 = vector.broadcast %cst : f32 to vector<12x256xf32>
    %9 = arith.maximumf %7, %8 : vector<12x256xf32>
    %c0_6 = arith.constant 0 : index
    %c0_7 = arith.constant 0 : index
    %c0_8 = arith.constant 0 : index
    %10 = vector.load %arg5[%c0_6, %c0_7, %c0_8] : memref<1x12x256xf32, #tpu.memory_space<vmem>>, vector<1x12x256xf32>
    %11 = vector.shape_cast %10 : vector<1x12x256xf32> to vector<12x256xf32>
    %12 = vector.shape_cast %9 : vector<12x256xf32> to vector<1x12x256xf32>
    tpu.vector_store %arg5[%c0_6, %c0_7, %c0_8], %12 {strides = array<i32>} : memref<1x12x256xf32, #tpu.memory_space<vmem>>, vector<1x12x256xf32>,
    return
  }
  func.func @transform_0(%arg0: i32, %arg1: i32) -> (i32, i32, i32) {
    %c0_i32 = arith.constant 0 : i32
    %c0_i32_0 = arith.constant 0 : i32
    return %arg0, %c0_i32, %arg1 : i32, i32, i32
  }
  func.func @transform_1(%arg0: i32, %arg1: i32) -> (i32, i32) {
    %c0_i32 = arith.constant 0 : i32
    %c0_i32_0 = arith.constant 0 : i32
    %c0_i32_1 = arith.constant 0 : i32
    return %c0_i32, %c0_i32_0 : i32, i32
  }
  func.func @transform_2(%arg0: i32, %arg1: i32) -> (i32, i32) {
    %c0_i32 = arith.constant 0 : i32
    %c0_i32_0 = arith.constant 0 : i32
    %c0_i32_1 = arith.constant 0 : i32
    return %c0_i32, %c0_i32_0 : i32, i32
  }
  func.func @transform_3(%arg0: i32, %arg1: i32) -> (i32, i32, i32) {
    %c0_i32 = arith.constant 0 : i32
    %c0_i32_0 = arith.constant 0 : i32
    return %arg0, %c0_i32, %arg1 : i32, i32, i32
  }
}

module attributes {stable_mosaic.version = 11 : i64} {
  func.func @_bn_add_relu_kernel(%arg0: i32, %arg1: i32, %arg2: memref<1x12x256xf32, #tpu.memory_space<vmem>>, %arg3: memref<1x12x256xf32, #tpu.memory_space<vmem>>, %arg4: memref<12x1xf32, #tpu.memory_space<vmem>>, %arg5: memref<12x1xf32, #tpu.memory_space<vmem>>, %arg6: memref<1x12x256xf32, #tpu.memory_space<vmem>>) attributes {dimension_semantics = [#tpu.dimension_semantics<parallel>, #tpu.dimension_semantics<parallel>], iteration_bounds = array<i64: 2, 1>, scalar_prefetch = 0 : i64, scratch_operands = 0 : i64, tpu.core_type = #tpu.core_type<tc>, window_params = [{transform_indices = @transform_0, window_bounds = array<i64: 1, 12, 256>}, {transform_indices = @transform_1, window_bounds = array<i64: 1, 12, 256>}, {pipeline_mode = #tpu.pipeline_mode<synchronous>, transform_indices = @transform_2, window_bounds = array<i64: 12, 1>}, {pipeline_mode = #tpu.pipeline_mode<synchronous>, transform_indices = @transform_3, window_bounds = array<i64: 12, 1>}, {transform_indices = @transform_4, window_bounds = array<i64: 1, 12, 256>}]} {
    %c0 = arith.constant 0 : index
    %c0_0 = arith.constant 0 : index
    %c0_1 = arith.constant 0 : index
    %0 = vector.load %arg2[%c0, %c0_0, %c0_1] : memref<1x12x256xf32, #tpu.memory_space<vmem>>, vector<1x12x256xf32>
    %1 = vector.shape_cast %0 : vector<1x12x256xf32> to vector<12x256xf32>
    %c0_2 = arith.constant 0 : index
    %c0_3 = arith.constant 0 : index
    %2 = vector.load %arg4[%c0_2, %c0_3] : memref<12x1xf32, #tpu.memory_space<vmem>>, vector<12x1xf32>
    %3 = vector.broadcast %2 : vector<12x1xf32> to vector<12x256xf32>
    %4 = arith.mulf %1, %3 : vector<12x256xf32>
    %c0_4 = arith.constant 0 : index
    %c0_5 = arith.constant 0 : index
    %5 = vector.load %arg5[%c0_4, %c0_5] : memref<12x1xf32, #tpu.memory_space<vmem>>, vector<12x1xf32>
    %6 = vector.broadcast %5 : vector<12x1xf32> to vector<12x256xf32>
    %7 = arith.addf %4, %6 : vector<12x256xf32>
    %c0_6 = arith.constant 0 : index
    %c0_7 = arith.constant 0 : index
    %c0_8 = arith.constant 0 : index
    %8 = vector.load %arg3[%c0_6, %c0_7, %c0_8] : memref<1x12x256xf32, #tpu.memory_space<vmem>>, vector<1x12x256xf32>
    %9 = vector.shape_cast %8 : vector<1x12x256xf32> to vector<12x256xf32>
    %10 = arith.addf %7, %9 : vector<12x256xf32>
    %cst = arith.constant 0.000000e+00 : f32
    %11 = vector.broadcast %cst : f32 to vector<12x256xf32>
    %12 = arith.maximumf %10, %11 : vector<12x256xf32>
    %c0_9 = arith.constant 0 : index
    %c0_10 = arith.constant 0 : index
    %c0_11 = arith.constant 0 : index
    %13 = vector.load %arg6[%c0_9, %c0_10, %c0_11] : memref<1x12x256xf32, #tpu.memory_space<vmem>>, vector<1x12x256xf32>
    %14 = vector.shape_cast %13 : vector<1x12x256xf32> to vector<12x256xf32>
    %15 = vector.shape_cast %12 : vector<12x256xf32> to vector<1x12x256xf32>
    tpu.vector_store %arg6[%c0_9, %c0_10, %c0_11], %15 {strides = array<i32>} : memref<1x12x256xf32, #tpu.memory_space<vmem>>, vector<1x12x256xf32>,
    return
  }
  func.func @transform_0(%arg0: i32, %arg1: i32) -> (i32, i32, i32) {
    %c0_i32 = arith.constant 0 : i32
    %c0_i32_0 = arith.constant 0 : i32
    return %arg0, %c0_i32, %arg1 : i32, i32, i32
  }
  func.func @transform_1(%arg0: i32, %arg1: i32) -> (i32, i32, i32) {
    %c0_i32 = arith.constant 0 : i32
    %c0_i32_0 = arith.constant 0 : i32
    return %arg0, %c0_i32, %arg1 : i32, i32, i32
  }
  func.func @transform_2(%arg0: i32, %arg1: i32) -> (i32, i32) {
    %c0_i32 = arith.constant 0 : i32
    %c0_i32_0 = arith.constant 0 : i32
    %c0_i32_1 = arith.constant 0 : i32
    return %c0_i32, %c0_i32_0 : i32, i32
  }
  func.func @transform_3(%arg0: i32, %arg1: i32) -> (i32, i32) {
    %c0_i32 = arith.constant 0 : i32
    %c0_i32_0 = arith.constant 0 : i32
    %c0_i32_1 = arith.constant 0 : i32
    return %c0_i32, %c0_i32_0 : i32, i32
  }
  func.func @transform_4(%arg0: i32, %arg1: i32) -> (i32, i32, i32) {
    %c0_i32 = arith.constant 0 : i32
    %c0_i32_0 = arith.constant 0 : i32
    return %arg0, %c0_i32, %arg1 : i32, i32, i32
  }
}

</mosaic_0001>

<llo_original>
// kernel: basic_block_forward.4
$region0: #{basic_block_forward.4}
  #allocation0 [shape = 'u32[]', space=smem, size = 0x4, offset = 0x4, fixed_abs, tag = 'smem constant byte address 0x4 - core index']
  #allocation1 [shape = 'u32[72,128]{1,0:T(1,128)}', space=vmem, size = 0x9000, scoped, tag = 'internal scratch']
  %s0 = inlined_call_operand.vmem [shape: f32[2,108,256], index: 0, kind: input, shape index: {}]
  %s1 = inlined_call_operand.vmem [shape: f32[12,108], index: 1, kind: input, shape index: {}]
  %s2 = inlined_call_operand.vmem [shape: f32[2,12,256], index: 2, kind: output, shape index: {0}]
  %s3 = inlined_call_operand.vmem [shape: f32[2,1,12,1], index: 3, kind: output, shape index: {1}]
  %s4 = inlined_call_operand.vmem [shape: f32[2,1,12,1], index: 4, kind: output, shape index: {2}]
  %5 = xla_tuple %s2, %s3, %s4
  %s6 = sld [smem:[#allocation0]]
  $region57: #{basic_block_forward.4} parent=0
    _
  %s8 = ssub.s32 1, %s6
  %s9 = scalar_select 0, %s8, %s6
  loop: start=0, step=1, limit=4
  $region2: #{basic_block_forward.4} parent=0 // loop_pre_header
    _
  $region3: #{basic_block_forward.4} parent=0 // loop_header
    %s11 = sphi 0, %s15
    %p12 = scmp.ge.s32.totalorder %s11, 4
    %s18 = sphi 0, %s30
    %s19 = sphi 0, %s26
    %s20 = sphi 0, %s18
    %s21 = sphi 0, %s19
    %s22 = sphi 0, %s20
    %s23 = sphi 0, %s21
    %s35 = sphi 0, %s37
    %s38 = sphi 0, %s35
    %s39 = sphi 0, %s38
    %s55 = sphi 0, %s39
    %s59 = sphi 0, %s59
    %s61 = sphi 0, %s59
    %s62 = sphi 0, %s61
    %s76 = sphi 0, %s62
    %s84 = sphi 0, %s86
    %s87 = sphi 0, %s84
    %s88 = sphi 0, %s87
    %s104 = sphi 0, %s88
    %s112 = sphi 0, %s114
    %s115 = sphi 0, %s112
    %s116 = sphi 0, %s115
    %s132 = sphi 0, %s116
    %s140 = sphi 0, %s142
    %s143 = sphi 0, %s140
    %s144 = sphi 0, %s143
    %s160 = sphi 0, %s144
  $region4: #{basic_block_forward.4} parent=0 // loop_header_branch
    %14 = sbr.rel (%p12) target = $region8
  $region5: #{basic_block_forward.4} parent=0 // loop_body
    %s16 = ssub.s32 %s11, 1
    %s17 = ssub.s32 %s11, 2
    %s24 = sadd.s32 1, %s19
    %p25 = scmp.ge.s32.totalorder %s24, 1
    %s26 = scalar_select %p25, 0, %s24
    %s27 = sadd.s32 1, %s18
    %s28 = scalar_select %p25, %s27, %s18
    %p29 = scmp.ge.s32.totalorder %s28, 2
    %s30 = scalar_select %p29, 0, %s28
    %s31 = ssub.s32 %s18, %s30
    %s32 = ssub.s32 %s19, %s26
    %s33 = sor.u32 %s31, %s32
    %p34 = scmp.eq.s32.totalorder %s33, 0
    %s36 = sadd.s32 %s35, 1
    %s37 = scalar_select %p34, %s35, %s36
    %p40 = pneg %p34
    %p41 = scmp.eq.s32.totalorder %s11, 1
    %p42 = por %p40, %p41
    %p43 = scmp.ne.s32.totalorder %s35, %s38
    %p44 = scmp.eq.s32.totalorder %s11, 0
    %p45 = por %p43, %p44
    %p46 = scmp.ne.s32.totalorder %s35, %s38
    %p47 = scmp.eq.s32.totalorder %s16, 1
    %p48 = por %p46, %p47
    %p49 = scmp.ne.s32.totalorder %s38, %s39
    %p50 = scmp.eq.s32.totalorder %s16, 0
    %p51 = por %p49, %p50
    %p52 = scmp.ne.s32.totalorder %s38, %s39
    %p53 = scmp.eq.s32.totalorder %s17, 1
    %p54 = por %p52, %p53
    %p56 = scmp.ne.s32.totalorder %s39, %s55
    %p57 = scmp.eq.s32.totalorder %s17, 0
    %p58 = por %p56, %p57
    %s60 = sadd.s32 %s59, 1
    %p63 = scmp.eq.s32.totalorder %s11, 1
    %p64 = scmp.ne.s32.totalorder %s59, %s61
    %p65 = scmp.eq.s32.totalorder %s11, 0
    %p66 = por %p64, %p65
    %p67 = scmp.ne.s32.totalorder %s59, %s61
    %p68 = scmp.eq.s32.totalorder %s16, 1
    %p69 = por %p67, %p68
    %p70 = scmp.ne.s32.totalorder %s61, %s62
    %p71 = scmp.eq.s32.totalorder %s16, 0
    %p72 = por %p70, %p71
    %p73 = scmp.ne.s32.totalorder %s61, %s62
    %p74 = scmp.eq.s32.totalorder %s17, 1
    %p75 = por %p73, %p74
    %p77 = scmp.ne.s32.totalorder %s62, %s76
    %p78 = scmp.eq.s32.totalorder %s17, 0
    %p79 = por %p77, %p78
    %s80 = ssub.s32 %s18, %s30
    %s81 = ssub.s32 %s19, %s26
    %s82 = sor.u32 %s80, %s81
    %p83 = scmp.eq.s32.totalorder %s82, 0
    %s85 = sadd.s32 %s84, 1
    %s86 = scalar_select %p83, %s84, %s85
    %p89 = pneg %p83
    %p90 = scmp.eq.s32.totalorder %s11, 1
    %p91 = por %p89, %p90
    %p92 = scmp.ne.s32.totalorder %s84, %s87
    %p93 = scmp.eq.s32.totalorder %s11, 0
    %p94 = por %p92, %p93
    %p95 = scmp.ne.s32.totalorder %s84, %s87
    %p96 = scmp.eq.s32.totalorder %s16, 1
    %p97 = por %p95, %p96
    %p98 = scmp.ne.s32.totalorder %s87, %s88
    %p99 = scmp.eq.s32.totalorder %s16, 0
    %p100 = por %p98, %p99
    %p101 = scmp.ne.s32.totalorder %s87, %s88
    %p102 = scmp.eq.s32.totalorder %s17, 1
    %p103 = por %p101, %p102
    %p105 = scmp.ne.s32.totalorder %s88, %s104
    %p106 = scmp.eq.s32.totalorder %s17, 0
    %p107 = por %p105, %p106
    %s108 = ssub.s32 %s18, %s30
    %s109 = ssub.s32 %s19, %s26
    %s110 = sor.u32 %s108, %s109
    %p111 = scmp.eq.s32.totalorder %s110, 0
    %s113 = sadd.s32 %s112, 1
    %s114 = scalar_select %p111, %s112, %s113
    %p117 = pneg %p111
    %p118 = scmp.eq.s32.totalorder %s11, 1
    %p119 = por %p117, %p118
    %p120 = scmp.ne.s32.totalorder %s112, %s115
    %p121 = scmp.eq.s32.totalorder %s11, 0
    %p122 = por %p120, %p121
    %p123 = scmp.ne.s32.totalorder %s112, %s115
    %p124 = scmp.eq.s32.totalorder %s16, 1
    %p125 = por %p123, %p124
    %p126 = scmp.ne.s32.totalorder %s115, %s116
    %p127 = scmp.eq.s32.totalorder %s16, 0
    %p128 = por %p126, %p127
    %p129 = scmp.ne.s32.totalorder %s115, %s116
    %p130 = scmp.eq.s32.totalorder %s17, 1
    %p131 = por %p129, %p130
    %p133 = scmp.ne.s32.totalorder %s116, %s132
    %p134 = scmp.eq.s32.totalorder %s17, 0
    %p135 = por %p133, %p134
    %s136 = ssub.s32 %s18, %s30
    %s137 = ssub.s32 %s19, %s26
    %s138 = sor.u32 %s136, %s137
    %p139 = scmp.eq.s32.totalorder %s138, 0
    %s141 = sadd.s32 %s140, 1
    %s142 = scalar_select %p139, %s140, %s141
    %p145 = pneg %p139
    %p146 = scmp.eq.s32.totalorder %s11, 1
    %p147 = por %p145, %p146
    %p148 = scmp.ne.s32.totalorder %s140, %s143
    %p149 = scmp.eq.s32.totalorder %s11, 0
    %p150 = por %p148, %p149
    %p151 = scmp.ne.s32.totalorder %s140, %s143
    %p152 = scmp.eq.s32.totalorder %s16, 1
    %p153 = por %p151, %p152
    %p154 = scmp.ne.s32.totalorder %s143, %s144
    %p155 = scmp.eq.s32.totalorder %s16, 0
    %p156 = por %p154, %p155
    %p157 = scmp.ne.s32.totalorder %s143, %s144
    %p158 = scmp.eq.s32.totalorder %s17, 1
    %p159 = por %p157, %p158
    %p161 = scmp.ne.s32.totalorder %s144, %s160
    %p162 = scmp.eq.s32.totalorder %s17, 0
    %p163 = por %p161, %p162
    %p164 = scmp.le.s32.totalorder 1, %s11
    %p165 = scmp.lt.s32.totalorder %s11, 3
    %p166 = pnand %p164, %p165
    %p167 = pneg %p166
    // Predicated region
    $region9: #{basic_block_forward.4} parent=5 // pred_check
      _
    $region10: #{basic_block_forward.4} parent=5 // pred_check_branch
      %169 = sbr.rel (%p166) target = $region12
    $region11: #{basic_block_forward.4} parent=5 // pred_region
      %s170 = ssub.s32 %s11, 1
      // Predicated region
      $region13: #{basic_block_forward.4} parent=11 // pred_check
        %p171 = pneg %p72
      $region14: #{basic_block_forward.4} parent=11 // pred_check_branch
        %173 = sbr.rel (%p171) target = $region16
      $region15: #{basic_block_forward.4} parent=11 // pred_region
        _
      $region16: #{basic_block_forward.4} parent=11 // pred_fallthru
        _
    $region12: #{basic_block_forward.4} parent=5 // pred_fallthru
      _
    %p174 = scmp.lt.s32.totalorder %s11, 2
    // Predicated region
    $region17: #{basic_block_forward.4} parent=5 // pred_check
      %p175 = pneg %p174
    $region18: #{basic_block_forward.4} parent=5 // pred_check_branch
      %177 = sbr.rel (%p175) target = $region20
    $region19: #{basic_block_forward.4} parent=5 // pred_region
      // Predicated region
      $region21: #{basic_block_forward.4} parent=19 // pred_check
        %p178 = pneg %p45
      $region22: #{basic_block_forward.4} parent=19 // pred_check_branch
        %180 = sbr.rel (%p178) target = $region24
      $region23: #{basic_block_forward.4} parent=19 // pred_region
        %s181 = smul.u32 2, %s19
        %p182 = scmp.lt.s32.totalorder %s18, 1
        %s183 = scalar_select %p182, %s18, 1
        %p184 = scmp.lt.s32.totalorder %s181, 1
        %s185 = scalar_select %p184, %s181, 1
        %s186 = smul.addr %s183, 28
        %s187 = sadd.s32 %s185, %s186
        %s188 = smul.addr %s187, 8
        %s189 = scalar_lea.vmem %s0, %s188
        %s190 = smul.u32 2, %s19
      $region24: #{basic_block_forward.4} parent=19 // pred_fallthru
        _
    $region20: #{basic_block_forward.4} parent=5 // pred_fallthru
      _
    %p191 = scmp.le.s32.totalorder 1, %s11
    %p192 = scmp.lt.s32.totalorder %s11, 3
    %p193 = pnand %p191, %p192
    %p194 = pneg %p193
    // Predicated region
    $region25: #{basic_block_forward.4} parent=5 // pred_check
      _
    $region26: #{basic_block_forward.4} parent=5 // pred_check_branch
      %196 = sbr.rel (%p193) target = $region28
    $region27: #{basic_block_forward.4} parent=5 // pred_region
      %s197 = ssub.s32 %s11, 1
      %s198 = smul.u32 2, %s21
      %p199 = scmp.lt.s32.totalorder %s20, 1
      %s200 = scalar_select %p199, %s20, 1
      %p201 = scmp.lt.s32.totalorder %s198, 1
      %s202 = scalar_select %p201, %s198, 1
      %s203 = smul.addr %s200, 28
      %s204 = sadd.s32 %s202, %s203
      %s205 = smul.addr %s204, 8
      %s206 = scalar_lea.vmem %s0, %s205
      %p207 = pneg %p51
      %p208 = pneg %p48
      %p209 = pneg %p72
      %p210 = pneg %p69
      %p211 = pneg %p100
      %p212 = pneg %p97
      %s213 = smul.u32 2, %s21
      %p214 = scmp.lt.s32.totalorder %s20, 1
      %s215 = scalar_select %p214, %s20, 1
      %p216 = scmp.lt.s32.totalorder %s213, 1
      %s217 = scalar_select %p216, %s213, 1
      %s218 = smul.addr %s215, 4
      %s219 = sadd.s32 %s217, %s218
      %s220 = smul.addr %s219, 8
      %s221 = scalar_lea.vmem %s2, %s220
      %p222 = pneg %p128
      %p223 = pneg %p125
      %p224 = scmp.lt.s32.totalorder %s20, 1
      %s225 = scalar_select %p224, %s20, 1
      %p226 = scmp.lt.s32.totalorder %s21, 0
      %s227 = scalar_select %p226, %s21, 0
      %s228 = smul.addr %s227, 2
      %s229 = smul.addr %s225, 2
      %s230 = sadd.s32 %s228, %s229
      %s231 = smul.addr %s230, 8
      %s232 = scalar_lea.vmem %s3, %s231
      %p233 = pneg %p156
      %p234 = pneg %p153
      %p235 = scmp.lt.s32.totalorder %s20, 1
      %s236 = scalar_select %p235, %s20, 1
      %p237 = scmp.lt.s32.totalorder %s21, 0
      %s238 = scalar_select %p237, %s21, 0
      %s239 = smul.addr %s238, 2
      %s240 = smul.addr %s236, 2
      %s241 = sadd.s32 %s239, %s240
      %s242 = smul.addr %s241, 8
      %s243 = scalar_lea.vmem %s4, %s242
      %s244 = smul.u32 2, %s21
      %p245 = scmp.lt.s32.totalorder %s20, 1
      %s246 = scalar_select %p245, %s20, 1
      %p247 = scmp.lt.s32.totalorder %s244, 1
      %s248 = scalar_select %p247, %s244, 1
      %s249 = smul.addr %s246, 28
      %s250 = sadd.s32 %s248, %s249
      %s251 = smul.addr %s250, 8
      %s252 = scalar_lea.vmem %s0, %s251
      %s253 = smul.u32 2, %s21
      %s254 = smul.u32 2, %s21
      %p255 = scmp.lt.s32.totalorder %s20, 1
      %s256 = scalar_select %p255, %s20, 1
      %p257 = scmp.lt.s32.totalorder %s254, 1
      %s258 = scalar_select %p257, %s254, 1
      %s259 = smul.addr %s256, 4
      %s260 = sadd.s32 %s258, %s259
      %s261 = smul.addr %s260, 8
      %s262 = scalar_lea.vmem %s2, %s261
      %s263 = smul.u32 2, %s21
      %p264 = scmp.lt.s32.totalorder %s20, 1
      %s265 = scalar_select %p264, %s20, 1
      %p266 = scmp.lt.s32.totalorder %s21, 0
      %s267 = scalar_select %p266, %s21, 0
      %s268 = smul.addr %s267, 2
      %s269 = smul.addr %s265, 2
      %s270 = sadd.s32 %s268, %s269
      %s271 = smul.addr %s270, 8
      %s272 = scalar_lea.vmem %s3, %s271
      %p273 = scmp.lt.s32.totalorder %s20, 1
      %s274 = scalar_select %p273, %s20, 1
      %p275 = scmp.lt.s32.totalorder %s21, 0
      %s276 = scalar_select %p275, %s21, 0
      %s277 = smul.addr %s276, 2
      %s278 = smul.addr %s274, 2
      %s279 = sadd.s32 %s277, %s278
      %s280 = smul.addr %s279, 8
      %s281 = scalar_lea.vmem %s4, %s280
      %v282 = vld [vmem:[%s1] sm:$0xff]
      %v283 = vld [vmem:[%s1 + $0x8] sm:$0xf]
      %v284 = vld [vmem:[%s252] sm:$0xff]
      %v285 = vld [vmem:[%s252 + $0x8] sm:$0xff]
      %v286 = vld [vmem:[%s252 + $0x10] sm:$0xff]
      %v287 = vld [vmem:[%s252 + $0x18] sm:$0xff]
      %v288 = vld [vmem:[%s252 + $0x20] sm:$0xff]
      %v289 = vld [vmem:[%s252 + $0x28] sm:$0xff]
      %v290 = vld [vmem:[%s252 + $0x30] sm:$0xff]
      %v291 = vld [vmem:[%s252 + $0x38] sm:$0xff]
      %v292 = vld [vmem:[%s252 + $0x40] sm:$0xff]
      %v293 = vld [vmem:[%s252 + $0x48] sm:$0xff]
      %v294 = vld [vmem:[%s252 + $0x50] sm:$0xff]
      %v295 = vld [vmem:[%s252 + $0x58] sm:$0xff]
      %v296 = vld [vmem:[%s252 + $0x60] sm:$0xff]
      %v297 = vld [vmem:[%s252 + $0x68] sm:$0xff]
      %v298 = vld [vmem:[%s252 + $0x70] sm:$0xff]
      %v299 = vld [vmem:[%s252 + $0x78] sm:$0xff]
      %v300 = vld [vmem:[%s252 + $0x80] sm:$0xff]
      %v301 = vld [vmem:[%s252 + $0x88] sm:$0xff]
      %v302 = vld [vmem:[%s252 + $0x90] sm:$0xff]
      %v303 = vld [vmem:[%s252 + $0x98] sm:$0xff]
      %v304 = vld [vmem:[%s252 + $0xa0] sm:$0xff]
      %v305 = vld [vmem:[%s252 + $0xa8] sm:$0xff]
      %v306 = vld [vmem:[%s252 + $0xb0] sm:$0xff]
      %v307 = vld [vmem:[%s252 + $0xb8] sm:$0xff]
      %v308 = vld [vmem:[%s252 + $0xc0] sm:$0xff]
      %v309 = vld [vmem:[%s252 + $0xc8] sm:$0xff]
      %v310 = vld [vmem:[%s252 + $0xd0] sm:$0xf]
      %v311 = vld [vmem:[%s252 + $0xd8] sm:$0xf]
      %vm312 = vcmask 883712
      %v314 = vsel %vm312, %v282, 0
      %v317 = vsel %vm312, %v283, 0
      %vm319 = vcmask 1043456
      %v321 = vsel %vm319, %v310, 0
      %v324 = vsel %vm319, %v311, 0
      %326 = vmatpush.msra.mxu0 0.0
      %327 = vmatpush.msra.mxu0 0.0
      %328 = vmatpush.msra.mxu0 %v321
      %329 = vmatpush.msra.mxu0 %v308
      %330 = vmatpush.msra.mxu0 %v306
      %331 = vmatpush.msra.mxu0 %v304
      %332 = vmatpush.msra.mxu0 %v302
      %333 = vmatpush.msra.mxu0 %v300
      %334 = vmatpush.msra.mxu0 %v298
      %335 = vmatpush.msra.mxu0 %v296
      %336 = vmatpush.msra.mxu0 %v294
      %337 = vmatpush.msra.mxu0 %v292
      %338 = vmatpush.msra.mxu0 %v290
      %339 = vmatpush.msra.mxu0 %v288
      %340 = vmatpush.msra.mxu0 %v286
      %341 = vmatpush.msra.mxu0 %v284
      %342 = vmatmul.f32.gmra.mxu0 %v314
      %v343 = vpop.f32.mrf.mxu0
      %v344 = vadd.f32 0.0, %v343
      %345 = vmatmul.f32.gmra.mxu0 %v317
      %v346 = vpop.f32.mrf.mxu0
      %v347 = vadd.f32 0.0, %v346
      %348 = vdwg.mxu0
      %349 = vmatpush.msra.mxu0 0.0
      %350 = vmatpush.msra.mxu0 0.0
      %351 = vmatpush.msra.mxu0 %v324
      %352 = vmatpush.msra.mxu0 %v309
      %353 = vmatpush.msra.mxu0 %v307
      %354 = vmatpush.msra.mxu0 %v305
      %355 = vmatpush.msra.mxu0 %v303
      %356 = vmatpush.msra.mxu0 %v301
      %357 = vmatpush.msra.mxu0 %v299
      %358 = vmatpush.msra.mxu0 %v297
      %359 = vmatpush.msra.mxu0 %v295
      %360 = vmatpush.msra.mxu0 %v293
      %361 = vmatpush.msra.mxu0 %v291
      %362 = vmatpush.msra.mxu0 %v289
      %363 = vmatpush.msra.mxu0 %v287
      %364 = vmatpush.msra.mxu0 %v285
      %365 = vmatmul.f32.gmra.mxu0 %v314
      %v366 = vpop.f32.mrf.mxu0
      %v367 = vadd.f32 0.0, %v366
      %368 = vmatmul.f32.gmra.mxu0 %v317
      %v369 = vpop.f32.mrf.mxu0
      %v370 = vadd.f32 0.0, %v369
      %371 = vdwg.mxu0
      %372 = vst [vmem:[%s262] sm:$0xff] %v344
      %373 = vst [vmem:[%s262 + $0x8] sm:$0xff] %v367
      %374 = vst [vmem:[%s262 + $0x10] sm:$0xf] %v347
      %375 = vst [vmem:[%s262 + $0x18] sm:$0xf] %v370
      %v376 = vadd.f32 %v344, %v367
      %377 = vadd.xlane.f32.xlu0 %v376
      %v378 = vpop.xlane.xlu0 %377
      %v379 = vsel %vm319, %v347, 0.0
      %v380 = vsel %vm319, %v370, 0.0
      %v381 = vadd.f32 %v379, %v380
      %382 = vadd.xlane.f32.xlu0 %v381
      %v383 = vpop.xlane.xlu0 %382
      %vm384 = vcmask 7168
      %385 = vst.msk [vmem:[%s272] sm:$0xff] %vm384, %v378
      %vm386 = vcmask 3072
      %387 = vst.msk [vmem:[%s272 + $0x8] sm:$0xf] %vm386, %v383
      %v388 = vmul.f32 %v344, %v344
      %v389 = vmul.f32 %v367, %v367
      %v390 = vmul.f32 %v347, %v347
      %v391 = vmul.f32 %v370, %v370
      %v392 = vadd.f32 %v388, %v389
      %393 = vadd.xlane.f32.xlu0 %v392
      %v394 = vpop.xlane.xlu0 %393
      %v395 = vsel %vm319, %v390, 0.0
      %v396 = vsel %vm319, %v391, 0.0
      %v397 = vadd.f32 %v395, %v396
      %398 = vadd.xlane.f32.xlu0 %v397
      %v399 = vpop.xlane.xlu0 %398
      %400 = vst.msk [vmem:[%s281] sm:$0xff] %vm384, %v394
      %401 = vst.msk [vmem:[%s281 + $0x8] sm:$0xf] %vm386, %v399
      %s402 = smul.u32 2, %s21
      %p403 = scmp.lt.s32.totalorder %s20, 1
      %s404 = scalar_select %p403, %s20, 1
      %p405 = scmp.lt.s32.totalorder %s402, 1
      %s406 = scalar_select %p405, %s402, 1
      %s407 = smul.addr %s404, 4
      %s408 = sadd.s32 %s406, %s407
      %s409 = smul.addr %s408, 8
      %s410 = scalar_lea.vmem %s2, %s409
      %p411 = scmp.lt.s32.totalorder %s20, 1
      %s412 = scalar_select %p411, %s20, 1
      %p413 = scmp.lt.s32.totalorder %s21, 0
      %s414 = scalar_select %p413, %s21, 0
      %s415 = smul.addr %s414, 2
      %s416 = smul.addr %s412, 2
      %s417 = sadd.s32 %s415, %s416
      %s418 = smul.addr %s417, 8
      %s419 = scalar_lea.vmem %s3, %s418
      %p420 = scmp.lt.s32.totalorder %s20, 1
      %s421 = scalar_select %p420, %s20, 1
      %p422 = scmp.lt.s32.totalorder %s21, 0
      %s423 = scalar_select %p422, %s21, 0
      %s424 = smul.addr %s423, 2
      %s425 = smul.addr %s421, 2
      %s426 = sadd.s32 %s424, %s425
      %s427 = smul.addr %s426, 8
      %s428 = scalar_lea.vmem %s4, %s427
      // Predicated region
      $region29: #{basic_block_forward.4} parent=27 // pred_check
        %p429 = pneg %p97
      $region30: #{basic_block_forward.4} parent=27 // pred_check_branch
        %431 = sbr.rel (%p429) target = $region32
      $region31: #{basic_block_forward.4} parent=27 // pred_region
        %s432 = smul.u32 2, %s21
      $region32: #{basic_block_forward.4} parent=27 // pred_fallthru
        _
      // Predicated region
      $region33: #{basic_block_forward.4} parent=27 // pred_check
        %p433 = pneg %p125
      $region34: #{basic_block_forward.4} parent=27 // pred_check_branch
        %435 = sbr.rel (%p433) target = $region36
      $region35: #{basic_block_forward.4} parent=27 // pred_region
        _
      $region36: #{basic_block_forward.4} parent=27 // pred_fallthru
        _
      // Predicated region
      $region37: #{basic_block_forward.4} parent=27 // pred_check
        %p436 = pneg %p153
      $region38: #{basic_block_forward.4} parent=27 // pred_check_branch
        %438 = sbr.rel (%p436) target = $region40
      $region39: #{basic_block_forward.4} parent=27 // pred_region
        _
      $region40: #{basic_block_forward.4} parent=27 // pred_fallthru
        _
    $region28: #{basic_block_forward.4} parent=5 // pred_fallthru
      _
    %p439 = scmp.le.s32.totalorder 2, %s11
    // Predicated region
    $region41: #{basic_block_forward.4} parent=5 // pred_check
      %p440 = pneg %p439
    $region42: #{basic_block_forward.4} parent=5 // pred_check_branch
      %442 = sbr.rel (%p440) target = $region44
    $region43: #{basic_block_forward.4} parent=5 // pred_region
      %s443 = ssub.s32 %s11, 2
      // Predicated region
      $region45: #{basic_block_forward.4} parent=43 // pred_check
        %p444 = pneg %p103
      $region46: #{basic_block_forward.4} parent=43 // pred_check_branch
        %446 = sbr.rel (%p444) target = $region48
      $region47: #{basic_block_forward.4} parent=43 // pred_region
        %s447 = smul.u32 2, %s23
        %p448 = scmp.lt.s32.totalorder %s22, 1
        %s449 = scalar_select %p448, %s22, 1
        %p450 = scmp.lt.s32.totalorder %s447, 1
        %s451 = scalar_select %p450, %s447, 1
        %s452 = smul.addr %s449, 4
        %s453 = sadd.s32 %s451, %s452
        %s454 = smul.addr %s453, 8
        %s455 = scalar_lea.vmem %s2, %s454
      $region48: #{basic_block_forward.4} parent=43 // pred_fallthru
        _
      // Predicated region
      $region49: #{basic_block_forward.4} parent=43 // pred_check
        %p456 = pneg %p131
      $region50: #{basic_block_forward.4} parent=43 // pred_check_branch
        %458 = sbr.rel (%p456) target = $region52
      $region51: #{basic_block_forward.4} parent=43 // pred_region
        %p459 = scmp.lt.s32.totalorder %s22, 1
        %s460 = scalar_select %p459, %s22, 1
        %p461 = scmp.lt.s32.totalorder %s23, 0
        %s462 = scalar_select %p461, %s23, 0
        %s463 = smul.addr %s462, 2
        %s464 = smul.addr %s460, 2
        %s465 = sadd.s32 %s463, %s464
        %s466 = smul.addr %s465, 8
        %s467 = scalar_lea.vmem %s3, %s466
      $region52: #{basic_block_forward.4} parent=43 // pred_fallthru
        _
      // Predicated region
      $region53: #{basic_block_forward.4} parent=43 // pred_check
        %p468 = pneg %p159
      $region54: #{basic_block_forward.4} parent=43 // pred_check_branch
        %470 = sbr.rel (%p468) target = $region56
      $region55: #{basic_block_forward.4} parent=43 // pred_region
        %p471 = scmp.lt.s32.totalorder %s22, 1
        %s472 = scalar_select %p471, %s22, 1
        %p473 = scmp.lt.s32.totalorder %s23, 0
        %s474 = scalar_select %p473, %s23, 0
        %s475 = smul.addr %s474, 2
        %s476 = smul.addr %s472, 2
        %s477 = sadd.s32 %s475, %s476
        %s478 = smul.addr %s477, 8
        %s479 = scalar_lea.vmem %s4, %s478
      $region56: #{basic_block_forward.4} parent=43 // pred_fallthru
        _
    $region44: #{basic_block_forward.4} parent=5 // pred_fallthru
      _
  $region6: #{basic_block_forward.4} parent=0 // loop_footer
    %s15 = sadd.s32 1, %s11
  $region7: #{basic_block_forward.4} parent=0 // loop_footer_branch
    %10 = sbr.rel target = $region3
  $region8: #{basic_block_forward.4} parent=0 // loop_exit
    _

// kernel: basic_block_forward.5
$region0: #{basic_block_forward.5}
  #allocation0 [shape = 'u32[]', space=smem, size = 0x4, offset = 0x4, fixed_abs, tag = 'smem constant byte address 0x4 - core index']
  #allocation1 [shape = 'u32[72,128]{1,0:T(1,128)}', space=vmem, size = 0x9000, scoped, tag = 'internal scratch']
  %s0 = inlined_call_operand.vmem [shape: f32[2,12,256], index: 0, kind: input, shape index: {}]
  %s1 = inlined_call_operand.vmem [shape: f32[12,1], index: 1, kind: input, shape index: {}]
  %s2 = inlined_call_operand.vmem [shape: f32[12,1], index: 2, kind: input, shape index: {}]
  %s3 = inlined_call_operand.vmem [shape: f32[2,12,256], index: 3, kind: output, shape index: {}]
  %s4 = sld [smem:[#allocation0]]
  $region45: #{basic_block_forward.5} parent=0
    _
  %s6 = ssub.s32 1, %s4
  %s7 = scalar_select 0, %s6, %s4
  loop: start=0, step=1, limit=4
  $region2: #{basic_block_forward.5} parent=0 // loop_pre_header
    _
  $region3: #{basic_block_forward.5} parent=0 // loop_header
    %s9 = sphi 0, %s13
    %p10 = scmp.ge.s32.totalorder %s9, 4
    %s16 = sphi 0, %s28
    %s17 = sphi 0, %s24
    %s18 = sphi 0, %s16
    %s19 = sphi 0, %s17
    %s20 = sphi 0, %s18
    %s21 = sphi 0, %s19
    %s33 = sphi 0, %s35
    %s36 = sphi 0, %s33
    %s37 = sphi 0, %s36
    %s53 = sphi 0, %s37
    %s57 = sphi 0, %s57
    %s59 = sphi 0, %s57
    %s60 = sphi 0, %s59
    %s74 = sphi 0, %s60
    %s78 = sphi 0, %s78
    %s80 = sphi 0, %s78
    %s81 = sphi 0, %s80
    %s95 = sphi 0, %s81
    %s103 = sphi 0, %s105
    %s106 = sphi 0, %s103
    %s107 = sphi 0, %s106
    %s123 = sphi 0, %s107
  $region4: #{basic_block_forward.5} parent=0 // loop_header_branch
    %12 = sbr.rel (%p10) target = $region8
  $region5: #{basic_block_forward.5} parent=0 // loop_body
    %s14 = ssub.s32 %s9, 1
    %s15 = ssub.s32 %s9, 2
    %s22 = sadd.s32 1, %s17
    %p23 = scmp.ge.s32.totalorder %s22, 1
    %s24 = scalar_select %p23, 0, %s22
    %s25 = sadd.s32 1, %s16
    %s26 = scalar_select %p23, %s25, %s16
    %p27 = scmp.ge.s32.totalorder %s26, 2
    %s28 = scalar_select %p27, 0, %s26
    %s29 = ssub.s32 %s16, %s28
    %s30 = ssub.s32 %s17, %s24
    %s31 = sor.u32 %s29, %s30
    %p32 = scmp.eq.s32.totalorder %s31, 0
    %s34 = sadd.s32 %s33, 1
    %s35 = scalar_select %p32, %s33, %s34
    %p38 = pneg %p32
    %p39 = scmp.eq.s32.totalorder %s9, 1
    %p40 = por %p38, %p39
    %p41 = scmp.ne.s32.totalorder %s33, %s36
    %p42 = scmp.eq.s32.totalorder %s9, 0
    %p43 = por %p41, %p42
    %p44 = scmp.ne.s32.totalorder %s33, %s36
    %p45 = scmp.eq.s32.totalorder %s14, 1
    %p46 = por %p44, %p45
    %p47 = scmp.ne.s32.totalorder %s36, %s37
    %p48 = scmp.eq.s32.totalorder %s14, 0
    %p49 = por %p47, %p48
    %p50 = scmp.ne.s32.totalorder %s36, %s37
    %p51 = scmp.eq.s32.totalorder %s15, 1
    %p52 = por %p50, %p51
    %p54 = scmp.ne.s32.totalorder %s37, %s53
    %p55 = scmp.eq.s32.totalorder %s15, 0
    %p56 = por %p54, %p55
    %s58 = sadd.s32 %s57, 1
    %p61 = scmp.eq.s32.totalorder %s9, 1
    %p62 = scmp.ne.s32.totalorder %s57, %s59
    %p63 = scmp.eq.s32.totalorder %s9, 0
    %p64 = por %p62, %p63
    %p65 = scmp.ne.s32.totalorder %s57, %s59
    %p66 = scmp.eq.s32.totalorder %s14, 1
    %p67 = por %p65, %p66
    %p68 = scmp.ne.s32.totalorder %s59, %s60
    %p69 = scmp.eq.s32.totalorder %s14, 0
    %p70 = por %p68, %p69
    %p71 = scmp.ne.s32.totalorder %s59, %s60
    %p72 = scmp.eq.s32.totalorder %s15, 1
    %p73 = por %p71, %p72
    %p75 = scmp.ne.s32.totalorder %s60, %s74
    %p76 = scmp.eq.s32.totalorder %s15, 0
    %p77 = por %p75, %p76
    %s79 = sadd.s32 %s78, 1
    %p82 = scmp.eq.s32.totalorder %s9, 1
    %p83 = scmp.ne.s32.totalorder %s78, %s80
    %p84 = scmp.eq.s32.totalorder %s9, 0
    %p85 = por %p83, %p84
    %p86 = scmp.ne.s32.totalorder %s78, %s80
    %p87 = scmp.eq.s32.totalorder %s14, 1
    %p88 = por %p86, %p87
    %p89 = scmp.ne.s32.totalorder %s80, %s81
    %p90 = scmp.eq.s32.totalorder %s14, 0
    %p91 = por %p89, %p90
    %p92 = scmp.ne.s32.totalorder %s80, %s81
    %p93 = scmp.eq.s32.totalorder %s15, 1
    %p94 = por %p92, %p93
    %p96 = scmp.ne.s32.totalorder %s81, %s95
    %p97 = scmp.eq.s32.totalorder %s15, 0
    %p98 = por %p96, %p97
    %s99 = ssub.s32 %s16, %s28
    %s100 = ssub.s32 %s17, %s24
    %s101 = sor.u32 %s99, %s100
    %p102 = scmp.eq.s32.totalorder %s101, 0
    %s104 = sadd.s32 %s103, 1
    %s105 = scalar_select %p102, %s103, %s104
    %p108 = pneg %p102
    %p109 = scmp.eq.s32.totalorder %s9, 1
    %p110 = por %p108, %p109
    %p111 = scmp.ne.s32.totalorder %s103, %s106
    %p112 = scmp.eq.s32.totalorder %s9, 0
    %p113 = por %p111, %p112
    %p114 = scmp.ne.s32.totalorder %s103, %s106
    %p115 = scmp.eq.s32.totalorder %s14, 1
    %p116 = por %p114, %p115
    %p117 = scmp.ne.s32.totalorder %s106, %s107
    %p118 = scmp.eq.s32.totalorder %s14, 0
    %p119 = por %p117, %p118
    %p120 = scmp.ne.s32.totalorder %s106, %s107
    %p121 = scmp.eq.s32.totalorder %s15, 1
    %p122 = por %p120, %p121
    %p124 = scmp.ne.s32.totalorder %s107, %s123
    %p125 = scmp.eq.s32.totalorder %s15, 0
    %p126 = por %p124, %p125
    %p127 = scmp.le.s32.totalorder 1, %s9
    %p128 = scmp.lt.s32.totalorder %s9, 3
    %p129 = pnand %p127, %p128
    %p130 = pneg %p129
    // Predicated region
    $region9: #{basic_block_forward.5} parent=5 // pred_check
      _
    $region10: #{basic_block_forward.5} parent=5 // pred_check_branch
      %132 = sbr.rel (%p129) target = $region12
    $region11: #{basic_block_forward.5} parent=5 // pred_region
      %s133 = ssub.s32 %s9, 1
      // Predicated region
      $region13: #{basic_block_forward.5} parent=11 // pred_check
        %p134 = pneg %p70
      $region14: #{basic_block_forward.5} parent=11 // pred_check_branch
        %136 = sbr.rel (%p134) target = $region16
      $region15: #{basic_block_forward.5} parent=11 // pred_region
        _
      $region16: #{basic_block_forward.5} parent=11 // pred_fallthru
        _
      // Predicated region
      $region17: #{basic_block_forward.5} parent=11 // pred_check
        %p137 = pneg %p91
      $region18: #{basic_block_forward.5} parent=11 // pred_check_branch
        %139 = sbr.rel (%p137) target = $region20
      $region19: #{basic_block_forward.5} parent=11 // pred_region
        _
      $region20: #{basic_block_forward.5} parent=11 // pred_fallthru
        _
    $region12: #{basic_block_forward.5} parent=5 // pred_fallthru
      _
    %p140 = scmp.lt.s32.totalorder %s9, 2
    // Predicated region
    $region21: #{basic_block_forward.5} parent=5 // pred_check
      %p141 = pneg %p140
    $region22: #{basic_block_forward.5} parent=5 // pred_check_branch
      %143 = sbr.rel (%p141) target = $region24
    $region23: #{basic_block_forward.5} parent=5 // pred_region
      // Predicated region
      $region25: #{basic_block_forward.5} parent=23 // pred_check
        %p144 = pneg %p43
      $region26: #{basic_block_forward.5} parent=23 // pred_check_branch
        %146 = sbr.rel (%p144) target = $region28
      $region27: #{basic_block_forward.5} parent=23 // pred_region
        %s147 = smul.u32 2, %s17
        %p148 = scmp.lt.s32.totalorder %s16, 1
        %s149 = scalar_select %p148, %s16, 1
        %p150 = scmp.lt.s32.totalorder %s147, 1
        %s151 = scalar_select %p150, %s147, 1
        %s152 = smul.addr %s149, 4
        %s153 = sadd.s32 %s151, %s152
        %s154 = smul.addr %s153, 8
        %s155 = scalar_lea.vmem %s0, %s154
        %s156 = smul.u32 2, %s17
      $region28: #{basic_block_forward.5} parent=23 // pred_fallthru
        _
    $region24: #{basic_block_forward.5} parent=5 // pred_fallthru
      _
    %p157 = scmp.le.s32.totalorder 1, %s9
    %p158 = scmp.lt.s32.totalorder %s9, 3
    %p159 = pnand %p157, %p158
    %p160 = pneg %p159
    // Predicated region
    $region29: #{basic_block_forward.5} parent=5 // pred_check
      _
    $region30: #{basic_block_forward.5} parent=5 // pred_check_branch
      %162 = sbr.rel (%p159) target = $region32
    $region31: #{basic_block_forward.5} parent=5 // pred_region
      %s163 = ssub.s32 %s9, 1
      %s164 = smul.u32 2, %s19
      %p165 = scmp.lt.s32.totalorder %s18, 1
      %s166 = scalar_select %p165, %s18, 1
      %p167 = scmp.lt.s32.totalorder %s164, 1
      %s168 = scalar_select %p167, %s164, 1
      %s169 = smul.addr %s166, 4
      %s170 = sadd.s32 %s168, %s169
      %s171 = smul.addr %s170, 8
      %s172 = scalar_lea.vmem %s0, %s171
      %p173 = pneg %p49
      %p174 = pneg %p46
      %p175 = pneg %p70
      %p176 = pneg %p67
      %p177 = pneg %p91
      %p178 = pneg %p88
      %p179 = pneg %p119
      %p180 = pneg %p116
      %s181 = smul.u32 2, %s19
      %p182 = scmp.lt.s32.totalorder %s18, 1
      %s183 = scalar_select %p182, %s18, 1
      %p184 = scmp.lt.s32.totalorder %s181, 1
      %s185 = scalar_select %p184, %s181, 1
      %s186 = smul.addr %s183, 4
      %s187 = sadd.s32 %s185, %s186
      %s188 = smul.addr %s187, 8
      %s189 = scalar_lea.vmem %s3, %s188
      %s190 = smul.u32 2, %s19
      %p191 = scmp.lt.s32.totalorder %s18, 1
      %s192 = scalar_select %p191, %s18, 1
      %p193 = scmp.lt.s32.totalorder %s190, 1
      %s194 = scalar_select %p193, %s190, 1
      %s195 = smul.addr %s192, 4
      %s196 = sadd.s32 %s194, %s195
      %s197 = smul.addr %s196, 8
      %s198 = scalar_lea.vmem %s0, %s197
      %s199 = smul.u32 2, %s19
      %s200 = smul.u32 2, %s19
      %p201 = scmp.lt.s32.totalorder %s18, 1
      %s202 = scalar_select %p201, %s18, 1
      %p203 = scmp.lt.s32.totalorder %s200, 1
      %s204 = scalar_select %p203, %s200, 1
      %s205 = smul.addr %s202, 4
      %s206 = sadd.s32 %s204, %s205
      %s207 = smul.addr %s206, 8
      %s208 = scalar_lea.vmem %s3, %s207
      %s209 = smul.u32 2, %s19
      %v210 = vld [vmem:[%s198] sm:$0xff]
      %v211 = vld [vmem:[%s198 + $0x8] sm:$0xff]
      %v212 = vld [vmem:[%s198 + $0x10] sm:$0xf]
      %v213 = vld [vmem:[%s198 + $0x18] sm:$0xf]
      %v214 = vld [vmem:[%s1] sm:$0xff]
      %v215 = vld [vmem:[%s1 + $0x8] sm:$0xf]
      %217 = vset.pattern.permute.xlu0 0
      %218 = vperm.xlu0 %217, %v214
      %v219 = vpop.permute.xlu0 %218
      %222 = vset.pattern.permute.xlu0 0
      %223 = vperm.xlu0 %222, %v215
      %v224 = vpop.permute.xlu0 %223
      %v226 = vmul.f32 %v210, %v219
      %v227 = vmul.f32 %v211, %v219
      %v228 = vmul.f32 %v212, %v224
      %v229 = vmul.f32 %v213, %v224
      %v230 = vld [vmem:[%s2] sm:$0xff]
      %v231 = vld [vmem:[%s2 + $0x8] sm:$0xf]
      %233 = vset.pattern.permute.xlu0 0
      %234 = vperm.xlu0 %233, %v230
      %v235 = vpop.permute.xlu0 %234
      %238 = vset.pattern.permute.xlu0 0
      %239 = vperm.xlu0 %238, %v231
      %v240 = vpop.permute.xlu0 %239
      %v242 = vadd.f32 %v226, %v235
      %v243 = vadd.f32 %v227, %v235
      %v244 = vadd.f32 %v228, %v240
      %v245 = vadd.f32 %v229, %v240
      %v246 = vmax.f32 %v242, 0.0
      %v247 = vmax.f32 %v243, 0.0
      %v248 = vmax.f32 %v244, 0.0
      %v249 = vmax.f32 %v245, 0.0
      %250 = vst [vmem:[%s208] sm:$0xff] %v246
      %251 = vst [vmem:[%s208 + $0x8] sm:$0xff] %v247
      %252 = vst [vmem:[%s208 + $0x10] sm:$0xf] %v248
      %253 = vst [vmem:[%s208 + $0x18] sm:$0xf] %v249
      %s254 = smul.u32 2, %s19
      %p255 = scmp.lt.s32.totalorder %s18, 1
      %s256 = scalar_select %p255, %s18, 1
      %p257 = scmp.lt.s32.totalorder %s254, 1
      %s258 = scalar_select %p257, %s254, 1
      %s259 = smul.addr %s256, 4
      %s260 = sadd.s32 %s258, %s259
      %s261 = smul.addr %s260, 8
      %s262 = scalar_lea.vmem %s3, %s261
      // Predicated region
      $region33: #{basic_block_forward.5} parent=31 // pred_check
        %p263 = pneg %p116
      $region34: #{basic_block_forward.5} parent=31 // pred_check_branch
        %265 = sbr.rel (%p263) target = $region36
      $region35: #{basic_block_forward.5} parent=31 // pred_region
        %s266 = smul.u32 2, %s19
      $region36: #{basic_block_forward.5} parent=31 // pred_fallthru
        _
    $region32: #{basic_block_forward.5} parent=5 // pred_fallthru
      _
    %p267 = scmp.le.s32.totalorder 2, %s9
    // Predicated region
    $region37: #{basic_block_forward.5} parent=5 // pred_check
      %p268 = pneg %p267
    $region38: #{basic_block_forward.5} parent=5 // pred_check_branch
      %270 = sbr.rel (%p268) target = $region40
    $region39: #{basic_block_forward.5} parent=5 // pred_region
      %s271 = ssub.s32 %s9, 2
      // Predicated region
      $region41: #{basic_block_forward.5} parent=39 // pred_check
        %p272 = pneg %p122
      $region42: #{basic_block_forward.5} parent=39 // pred_check_branch
        %274 = sbr.rel (%p272) target = $region44
      $region43: #{basic_block_forward.5} parent=39 // pred_region
        %s275 = smul.u32 2, %s21
        %p276 = scmp.lt.s32.totalorder %s20, 1
        %s277 = scalar_select %p276, %s20, 1
        %p278 = scmp.lt.s32.totalorder %s275, 1
        %s279 = scalar_select %p278, %s275, 1
        %s280 = smul.addr %s277, 4
        %s281 = sadd.s32 %s279, %s280
        %s282 = smul.addr %s281, 8
        %s283 = scalar_lea.vmem %s3, %s282
      $region44: #{basic_block_forward.5} parent=39 // pred_fallthru
        _
    $region40: #{basic_block_forward.5} parent=5 // pred_fallthru
      _
  $region6: #{basic_block_forward.5} parent=0 // loop_footer
    %s13 = sadd.s32 1, %s9
  $region7: #{basic_block_forward.5} parent=0 // loop_footer_branch
    %8 = sbr.rel target = $region3
  $region8: #{basic_block_forward.5} parent=0 // loop_exit
    _

// kernel: basic_block_forward.7
$region0: #{basic_block_forward.7}
  #allocation0 [shape = 'u32[]', space=smem, size = 0x4, offset = 0x4, fixed_abs, tag = 'smem constant byte address 0x4 - core index']
  #allocation1 [shape = 'u32[72,128]{1,0:T(1,128)}', space=vmem, size = 0x9000, scoped, tag = 'internal scratch']
  %s0 = inlined_call_operand.vmem [shape: f32[2,12,256], index: 0, kind: input, shape index: {}]
  %s1 = inlined_call_operand.vmem [shape: f32[2,12,256], index: 1, kind: input, shape index: {}]
  %s2 = inlined_call_operand.vmem [shape: f32[12,1], index: 2, kind: input, shape index: {}]
  %s3 = inlined_call_operand.vmem [shape: f32[12,1], index: 3, kind: input, shape index: {}]
  %s4 = inlined_call_operand.vmem [shape: f32[2,12,256], index: 4, kind: output, shape index: {}]
  %s5 = sld [smem:[#allocation0]]
  $region49: #{basic_block_forward.7} parent=0
    _
  %s7 = ssub.s32 1, %s5
  %s8 = scalar_select 0, %s7, %s5
  loop: start=0, step=1, limit=4
  $region2: #{basic_block_forward.7} parent=0 // loop_pre_header
    _
  $region3: #{basic_block_forward.7} parent=0 // loop_header
    %s10 = sphi 0, %s14
    %p11 = scmp.ge.s32.totalorder %s10, 4
    %s17 = sphi 0, %s29
    %s18 = sphi 0, %s25
    %s19 = sphi 0, %s17
    %s20 = sphi 0, %s18
    %s21 = sphi 0, %s19
    %s22 = sphi 0, %s20
    %s34 = sphi 0, %s36
    %s37 = sphi 0, %s34
    %s38 = sphi 0, %s37
    %s54 = sphi 0, %s38
    %s62 = sphi 0, %s64
    %s65 = sphi 0, %s62
    %s66 = sphi 0, %s65
    %s82 = sphi 0, %s66
    %s86 = sphi 0, %s86
    %s88 = sphi 0, %s86
    %s89 = sphi 0, %s88
    %s103 = sphi 0, %s89
    %s107 = sphi 0, %s107
    %s109 = sphi 0, %s107
    %s110 = sphi 0, %s109
    %s124 = sphi 0, %s110
    %s132 = sphi 0, %s134
    %s135 = sphi 0, %s132
    %s136 = sphi 0, %s135
    %s152 = sphi 0, %s136
  $region4: #{basic_block_forward.7} parent=0 // loop_header_branch
    %13 = sbr.rel (%p11) target = $region8
  $region5: #{basic_block_forward.7} parent=0 // loop_body
    %s15 = ssub.s32 %s10, 1
    %s16 = ssub.s32 %s10, 2
    %s23 = sadd.s32 1, %s18
    %p24 = scmp.ge.s32.totalorder %s23, 1
    %s25 = scalar_select %p24, 0, %s23
    %s26 = sadd.s32 1, %s17
    %s27 = scalar_select %p24, %s26, %s17
    %p28 = scmp.ge.s32.totalorder %s27, 2
    %s29 = scalar_select %p28, 0, %s27
    %s30 = ssub.s32 %s17, %s29
    %s31 = ssub.s32 %s18, %s25
    %s32 = sor.u32 %s30, %s31
    %p33 = scmp.eq.s32.totalorder %s32, 0
    %s35 = sadd.s32 %s34, 1
    %s36 = scalar_select %p33, %s34, %s35
    %p39 = pneg %p33
    %p40 = scmp.eq.s32.totalorder %s10, 1
    %p41 = por %p39, %p40
    %p42 = scmp.ne.s32.totalorder %s34, %s37
    %p43 = scmp.eq.s32.totalorder %s10, 0
    %p44 = por %p42, %p43
    %p45 = scmp.ne.s32.totalorder %s34, %s37
    %p46 = scmp.eq.s32.totalorder %s15, 1
    %p47 = por %p45, %p46
    %p48 = scmp.ne.s32.totalorder %s37, %s38
    %p49 = scmp.eq.s32.totalorder %s15, 0
    %p50 = por %p48, %p49
    %p51 = scmp.ne.s32.totalorder %s37, %s38
    %p52 = scmp.eq.s32.totalorder %s16, 1
    %p53 = por %p51, %p52
    %p55 = scmp.ne.s32.totalorder %s38, %s54
    %p56 = scmp.eq.s32.totalorder %s16, 0
    %p57 = por %p55, %p56
    %s58 = ssub.s32 %s17, %s29
    %s59 = ssub.s32 %s18, %s25
    %s60 = sor.u32 %s58, %s59
    %p61 = scmp.eq.s32.totalorder %s60, 0
    %s63 = sadd.s32 %s62, 1
    %s64 = scalar_select %p61, %s62, %s63
    %p67 = pneg %p61
    %p68 = scmp.eq.s32.totalorder %s10, 1
    %p69 = por %p67, %p68
    %p70 = scmp.ne.s32.totalorder %s62, %s65
    %p71 = scmp.eq.s32.totalorder %s10, 0
    %p72 = por %p70, %p71
    %p73 = scmp.ne.s32.totalorder %s62, %s65
    %p74 = scmp.eq.s32.totalorder %s15, 1
    %p75 = por %p73, %p74
    %p76 = scmp.ne.s32.totalorder %s65, %s66
    %p77 = scmp.eq.s32.totalorder %s15, 0
    %p78 = por %p76, %p77
    %p79 = scmp.ne.s32.totalorder %s65, %s66
    %p80 = scmp.eq.s32.totalorder %s16, 1
    %p81 = por %p79, %p80
    %p83 = scmp.ne.s32.totalorder %s66, %s82
    %p84 = scmp.eq.s32.totalorder %s16, 0
    %p85 = por %p83, %p84
    %s87 = sadd.s32 %s86, 1
    %p90 = scmp.eq.s32.totalorder %s10, 1
    %p91 = scmp.ne.s32.totalorder %s86, %s88
    %p92 = scmp.eq.s32.totalorder %s10, 0
    %p93 = por %p91, %p92
    %p94 = scmp.ne.s32.totalorder %s86, %s88
    %p95 = scmp.eq.s32.totalorder %s15, 1
    %p96 = por %p94, %p95
    %p97 = scmp.ne.s32.totalorder %s88, %s89
    %p98 = scmp.eq.s32.totalorder %s15, 0
    %p99 = por %p97, %p98
    %p100 = scmp.ne.s32.totalorder %s88, %s89
    %p101 = scmp.eq.s32.totalorder %s16, 1
    %p102 = por %p100, %p101
    %p104 = scmp.ne.s32.totalorder %s89, %s103
    %p105 = scmp.eq.s32.totalorder %s16, 0
    %p106 = por %p104, %p105
    %s108 = sadd.s32 %s107, 1
    %p111 = scmp.eq.s32.totalorder %s10, 1
    %p112 = scmp.ne.s32.totalorder %s107, %s109
    %p113 = scmp.eq.s32.totalorder %s10, 0
    %p114 = por %p112, %p113
    %p115 = scmp.ne.s32.totalorder %s107, %s109
    %p116 = scmp.eq.s32.totalorder %s15, 1
    %p117 = por %p115, %p116
    %p118 = scmp.ne.s32.totalorder %s109, %s110
    %p119 = scmp.eq.s32.totalorder %s15, 0
    %p120 = por %p118, %p119
    %p121 = scmp.ne.s32.totalorder %s109, %s110
    %p122 = scmp.eq.s32.totalorder %s16, 1
    %p123 = por %p121, %p122
    %p125 = scmp.ne.s32.totalorder %s110, %s124
    %p126 = scmp.eq.s32.totalorder %s16, 0
    %p127 = por %p125, %p126
    %s128 = ssub.s32 %s17, %s29
    %s129 = ssub.s32 %s18, %s25
    %s130 = sor.u32 %s128, %s129
    %p131 = scmp.eq.s32.totalorder %s130, 0
    %s133 = sadd.s32 %s132, 1
    %s134 = scalar_select %p131, %s132, %s133
    %p137 = pneg %p131
    %p138 = scmp.eq.s32.totalorder %s10, 1
    %p139 = por %p137, %p138
    %p140 = scmp.ne.s32.totalorder %s132, %s135
    %p141 = scmp.eq.s32.totalorder %s10, 0
    %p142 = por %p140, %p141
    %p143 = scmp.ne.s32.totalorder %s132, %s135
    %p144 = scmp.eq.s32.totalorder %s15, 1
    %p145 = por %p143, %p144
    %p146 = scmp.ne.s32.totalorder %s135, %s136
    %p147 = scmp.eq.s32.totalorder %s15, 0
    %p148 = por %p146, %p147
    %p149 = scmp.ne.s32.totalorder %s135, %s136
    %p150 = scmp.eq.s32.totalorder %s16, 1
    %p151 = por %p149, %p150
    %p153 = scmp.ne.s32.totalorder %s136, %s152
    %p154 = scmp.eq.s32.totalorder %s16, 0
    %p155 = por %p153, %p154
    %p156 = scmp.le.s32.totalorder 1, %s10
    %p157 = scmp.lt.s32.totalorder %s10, 3
    %p158 = pnand %p156, %p157
    %p159 = pneg %p158
    // Predicated region
    $region9: #{basic_block_forward.7} parent=5 // pred_check
      _
    $region10: #{basic_block_forward.7} parent=5 // pred_check_branch
      %161 = sbr.rel (%p158) target = $region12
    $region11: #{basic_block_forward.7} parent=5 // pred_region
      %s162 = ssub.s32 %s10, 1
      // Predicated region
      $region13: #{basic_block_forward.7} parent=11 // pred_check
        %p163 = pneg %p99
      $region14: #{basic_block_forward.7} parent=11 // pred_check_branch
        %165 = sbr.rel (%p163) target = $region16
      $region15: #{basic_block_forward.7} parent=11 // pred_region
        _
      $region16: #{basic_block_forward.7} parent=11 // pred_fallthru
        _
      // Predicated region
      $region17: #{basic_block_forward.7} parent=11 // pred_check
        %p166 = pneg %p120
      $region18: #{basic_block_forward.7} parent=11 // pred_check_branch
        %168 = sbr.rel (%p166) target = $region20
      $region19: #{basic_block_forward.7} parent=11 // pred_region
        _
      $region20: #{basic_block_forward.7} parent=11 // pred_fallthru
        _
    $region12: #{basic_block_forward.7} parent=5 // pred_fallthru
      _
    %p169 = scmp.lt.s32.totalorder %s10, 2
    // Predicated region
    $region21: #{basic_block_forward.7} parent=5 // pred_check
      %p170 = pneg %p169
    $region22: #{basic_block_forward.7} parent=5 // pred_check_branch
      %172 = sbr.rel (%p170) target = $region24
    $region23: #{basic_block_forward.7} parent=5 // pred_region
      // Predicated region
      $region25: #{basic_block_forward.7} parent=23 // pred_check
        %p173 = pneg %p44
      $region26: #{basic_block_forward.7} parent=23 // pred_check_branch
        %175 = sbr.rel (%p173) target = $region28
      $region27: #{basic_block_forward.7} parent=23 // pred_region
        %s176 = smul.u32 2, %s18
        %p177 = scmp.lt.s32.totalorder %s17, 1
        %s178 = scalar_select %p177, %s17, 1
        %p179 = scmp.lt.s32.totalorder %s176, 1
        %s180 = scalar_select %p179, %s176, 1
        %s181 = smul.addr %s178, 4
        %s182 = sadd.s32 %s180, %s181
        %s183 = smul.addr %s182, 8
        %s184 = scalar_lea.vmem %s0, %s183
        %s185 = smul.u32 2, %s18
      $region28: #{basic_block_forward.7} parent=23 // pred_fallthru
        _
      // Predicated region
      $region29: #{basic_block_forward.7} parent=23 // pred_check
        %p186 = pneg %p72
      $region30: #{basic_block_forward.7} parent=23 // pred_check_branch
        %188 = sbr.rel (%p186) target = $region32
      $region31: #{basic_block_forward.7} parent=23 // pred_region
        %s189 = smul.u32 2, %s18
        %p190 = scmp.lt.s32.totalorder %s17, 1
        %s191 = scalar_select %p190, %s17, 1
        %p192 = scmp.lt.s32.totalorder %s189, 1
        %s193 = scalar_select %p192, %s189, 1
        %s194 = smul.addr %s191, 4
        %s195 = sadd.s32 %s193, %s194
        %s196 = smul.addr %s195, 8
        %s197 = scalar_lea.vmem %s1, %s196
        %s198 = smul.u32 2, %s18
      $region32: #{basic_block_forward.7} parent=23 // pred_fallthru
        _
    $region24: #{basic_block_forward.7} parent=5 // pred_fallthru
      _
    %p199 = scmp.le.s32.totalorder 1, %s10
    %p200 = scmp.lt.s32.totalorder %s10, 3
    %p201 = pnand %p199, %p200
    %p202 = pneg %p201
    // Predicated region
    $region33: #{basic_block_forward.7} parent=5 // pred_check
      _
    $region34: #{basic_block_forward.7} parent=5 // pred_check_branch
      %204 = sbr.rel (%p201) target = $region36
    $region35: #{basic_block_forward.7} parent=5 // pred_region
      %s205 = ssub.s32 %s10, 1
      %s206 = smul.u32 2, %s20
      %p207 = scmp.lt.s32.totalorder %s19, 1
      %s208 = scalar_select %p207, %s19, 1
      %p209 = scmp.lt.s32.totalorder %s206, 1
      %s210 = scalar_select %p209, %s206, 1
      %s211 = smul.addr %s208, 4
      %s212 = sadd.s32 %s210, %s211
      %s213 = smul.addr %s212, 8
      %s214 = scalar_lea.vmem %s0, %s213
      %p215 = pneg %p50
      %p216 = pneg %p47
      %s217 = smul.u32 2, %s20
      %p218 = scmp.lt.s32.totalorder %s19, 1
      %s219 = scalar_select %p218, %s19, 1
      %p220 = scmp.lt.s32.totalorder %s217, 1
      %s221 = scalar_select %p220, %s217, 1
      %s222 = smul.addr %s219, 4
      %s223 = sadd.s32 %s221, %s222
      %s224 = smul.addr %s223, 8
      %s225 = scalar_lea.vmem %s1, %s224
      %p226 = pneg %p78
      %p227 = pneg %p75
      %p228 = pneg %p99
      %p229 = pneg %p96
      %p230 = pneg %p120
      %p231 = pneg %p117
      %p232 = pneg %p148
      %p233 = pneg %p145
      %s234 = smul.u32 2, %s20
      %p235 = scmp.lt.s32.totalorder %s19, 1
      %s236 = scalar_select %p235, %s19, 1
      %p237 = scmp.lt.s32.totalorder %s234, 1
      %s238 = scalar_select %p237, %s234, 1
      %s239 = smul.addr %s236, 4
      %s240 = sadd.s32 %s238, %s239
      %s241 = smul.addr %s240, 8
      %s242 = scalar_lea.vmem %s4, %s241
      %s243 = smul.u32 2, %s20
      %p244 = scmp.lt.s32.totalorder %s19, 1
      %s245 = scalar_select %p244, %s19, 1
      %p246 = scmp.lt.s32.totalorder %s243, 1
      %s247 = scalar_select %p246, %s243, 1
      %s248 = smul.addr %s245, 4
      %s249 = sadd.s32 %s247, %s248
      %s250 = smul.addr %s249, 8
      %s251 = scalar_lea.vmem %s0, %s250
      %s252 = smul.u32 2, %s20
      %s253 = smul.u32 2, %s20
      %p254 = scmp.lt.s32.totalorder %s19, 1
      %s255 = scalar_select %p254, %s19, 1
      %p256 = scmp.lt.s32.totalorder %s253, 1
      %s257 = scalar_select %p256, %s253, 1
      %s258 = smul.addr %s255, 4
      %s259 = sadd.s32 %s257, %s258
      %s260 = smul.addr %s259, 8
      %s261 = scalar_lea.vmem %s1, %s260
      %s262 = smul.u32 2, %s20
      %s263 = smul.u32 2, %s20
      %p264 = scmp.lt.s32.totalorder %s19, 1
      %s265 = scalar_select %p264, %s19, 1
      %p266 = scmp.lt.s32.totalorder %s263, 1
      %s267 = scalar_select %p266, %s263, 1
      %s268 = smul.addr %s265, 4
      %s269 = sadd.s32 %s267, %s268
      %s270 = smul.addr %s269, 8
      %s271 = scalar_lea.vmem %s4, %s270
      %s272 = smul.u32 2, %s20
      %v273 = vld [vmem:[%s251] sm:$0xff]
      %v274 = vld [vmem:[%s251 + $0x8] sm:$0xff]
      %v275 = vld [vmem:[%s251 + $0x10] sm:$0xf]
      %v276 = vld [vmem:[%s251 + $0x18] sm:$0xf]
      %v277 = vld [vmem:[%s2] sm:$0xff]
      %v278 = vld [vmem:[%s2 + $0x8] sm:$0xf]
      %280 = vset.pattern.permute.xlu0 0
      %281 = vperm.xlu0 %280, %v277
      %v282 = vpop.permute.xlu0 %281
      %285 = vset.pattern.permute.xlu0 0
      %286 = vperm.xlu0 %285, %v278
      %v287 = vpop.permute.xlu0 %286
      %v289 = vmul.f32 %v273, %v282
      %v290 = vmul.f32 %v274, %v282
      %v291 = vmul.f32 %v275, %v287
      %v292 = vmul.f32 %v276, %v287
      %v293 = vld [vmem:[%s3] sm:$0xff]
      %v294 = vld [vmem:[%s3 + $0x8] sm:$0xf]
      %296 = vset.pattern.permute.xlu0 0
      %297 = vperm.xlu0 %296, %v293
      %v298 = vpop.permute.xlu0 %297
      %301 = vset.pattern.permute.xlu0 0
      %302 = vperm.xlu0 %301, %v294
      %v303 = vpop.permute.xlu0 %302
      %v305 = vadd.f32 %v289, %v298
      %v306 = vadd.f32 %v290, %v298
      %v307 = vadd.f32 %v291, %v303
      %v308 = vadd.f32 %v292, %v303
      %v309 = vld [vmem:[%s261] sm:$0xff]
      %v310 = vld [vmem:[%s261 + $0x8] sm:$0xff]
      %v311 = vld [vmem:[%s261 + $0x10] sm:$0xf]
      %v312 = vld [vmem:[%s261 + $0x18] sm:$0xf]
      %v313 = vadd.f32 %v305, %v309
      %v314 = vadd.f32 %v306, %v310
      %v315 = vadd.f32 %v307, %v311
      %v316 = vadd.f32 %v308, %v312
      %v317 = vmax.f32 %v313, 0.0
      %v318 = vmax.f32 %v314, 0.0
      %v319 = vmax.f32 %v315, 0.0
      %v320 = vmax.f32 %v316, 0.0
      %321 = vst [vmem:[%s271] sm:$0xff] %v317
      %322 = vst [vmem:[%s271 + $0x8] sm:$0xff] %v318
      %323 = vst [vmem:[%s271 + $0x10] sm:$0xf] %v319
      %324 = vst [vmem:[%s271 + $0x18] sm:$0xf] %v320
      %s325 = smul.u32 2, %s20
      %p326 = scmp.lt.s32.totalorder %s19, 1
      %s327 = scalar_select %p326, %s19, 1
      %p328 = scmp.lt.s32.totalorder %s325, 1
      %s329 = scalar_select %p328, %s325, 1
      %s330 = smul.addr %s327, 4
      %s331 = sadd.s32 %s329, %s330
      %s332 = smul.addr %s331, 8
      %s333 = scalar_lea.vmem %s4, %s332
      // Predicated region
      $region37: #{basic_block_forward.7} parent=35 // pred_check
        %p334 = pneg %p145
      $region38: #{basic_block_forward.7} parent=35 // pred_check_branch
        %336 = sbr.rel (%p334) target = $region40
      $region39: #{basic_block_forward.7} parent=35 // pred_region
        %s337 = smul.u32 2, %s20
      $region40: #{basic_block_forward.7} parent=35 // pred_fallthru
        _
    $region36: #{basic_block_forward.7} parent=5 // pred_fallthru
      _
    %p338 = scmp.le.s32.totalorder 2, %s10
    // Predicated region
    $region41: #{basic_block_forward.7} parent=5 // pred_check
      %p339 = pneg %p338
    $region42: #{basic_block_forward.7} parent=5 // pred_check_branch
      %341 = sbr.rel (%p339) target = $region44
    $region43: #{basic_block_forward.7} parent=5 // pred_region
      %s342 = ssub.s32 %s10, 2
      // Predicated region
      $region45: #{basic_block_forward.7} parent=43 // pred_check
        %p343 = pneg %p151
      $region46: #{basic_block_forward.7} parent=43 // pred_check_branch
        %345 = sbr.rel (%p343) target = $region48
      $region47: #{basic_block_forward.7} parent=43 // pred_region
        %s346 = smul.u32 2, %s22
        %p347 = scmp.lt.s32.totalorder %s21, 1
        %s348 = scalar_select %p347, %s21, 1
        %p349 = scmp.lt.s32.totalorder %s346, 1
        %s350 = scalar_select %p349, %s346, 1
        %s351 = smul.addr %s348, 4
        %s352 = sadd.s32 %s350, %s351
        %s353 = smul.addr %s352, 8
        %s354 = scalar_lea.vmem %s4, %s353
      $region48: #{basic_block_forward.7} parent=43 // pred_fallthru
        _
    $region44: #{basic_block_forward.7} parent=5 // pred_fallthru
      _
  $region6: #{basic_block_forward.7} parent=0 // loop_footer
    %s14 = sadd.s32 1, %s10
  $region7: #{basic_block_forward.7} parent=0 // loop_footer_branch
    %9 = sbr.rel target = $region3
  $region8: #{basic_block_forward.7} parent=0 // loop_exit
    _

</llo_original>
